<compile_context>
chip_gen: v6e
topology: v6e:2x2x1
jax: 0.10.0
libtpu: 0.0.40
codegen_flags: <defaults>
</compile_context>

<pallas_src>
import functools
from math import sqrt

import jax
import jax.numpy as jnp
from jax.experimental import pallas as pl
from jax.experimental.pallas import tpu as pltpu

NUM_POOLS = [1, 4, 16]                       # module default
SIDE_LENGTHS = [int(sqrt(p)) for p in NUM_POOLS]
assert all(s * s == p for s, p in zip(SIDE_LENGTHS, NUM_POOLS))
TOTAL_BINS = sum(NUM_POOLS)                  # 21

# TODO(synk): only mode='max' (the module default) is implemented; 'avg' would
# be a sum/scale variant of the same kernel.


def _spp_kernel(x_ref, o_ref, *, H, W, sides):
    """x_ref: (Nb, H, W, Cb) NHWC block -- channels on the lane axis.
    o_ref: (Nb, TOTAL_BINS, Cb) -- one lane-dense row per pyramid bin."""

    def bin_max(h0, h1, w0, w1):
        # Static Ref slice: only this bin's window is loaded from VMEM.
        win = x_ref[:, h0:h1, w0:w1, :]        # (Nb, hh, ww, Cb)
        rowmax = jnp.max(win, axis=1)          # VPU elementwise max over H rows
        return jnp.max(rowmax, axis=1)         # sublane max over W -> (Nb, Cb)

    hierarchical = (list(sides) == [1, 2, 4] and H % 4 == 0 and W % 4 == 0)

    if hierarchical:
        # One sweep: 16 fine 4x4 bins; 2x2 and 1x1 levels derived from them.
        hs, ws = H // 4, W // 4
        fine = [[bin_max(i * hs, (i + 1) * hs, j * ws, (j + 1) * ws)
                 for j in range(4)] for i in range(4)]
        coarse = [[jnp.maximum(
                       jnp.maximum(fine[2 * i][2 * j],     fine[2 * i][2 * j + 1]),
                       jnp.maximum(fine[2 * i + 1][2 * j], fine[2 * i + 1][2 * j + 1]))
                   for j in range(2)] for i in range(2)]
        glob = jnp.maximum(jnp.maximum(coarse[0][0], coarse[0][1]),
                           jnp.maximum(coarse[1][0], coarse[1][1]))
        rows = ([glob]
                + [coarse[i][j] for i in range(2) for j in range(2)]
                + [fine[i][j] for i in range(4) for j in range(4)])
    else:
        # Direct path (PyTorch adaptive-pool boundaries; windows may overlap).
        rows = []
        for s in sides:
            for i in range(s):
                h0 = (i * H) // s
                h1 = -((-(i + 1) * H) // s)          # ceil((i+1)*H/s)
                for j in range(s):
                    w0 = (j * W) // s
                    w1 = -((-(j + 1) * W) // s)      # ceil((j+1)*W/s)
                    rows.append(bin_max(h0, h1, w0, w1))

    # Write each bin directly as a row of the (21, Cb) output -- lane-dense,
    # no 21-wide lane-axis concatenation.
    for b, v in enumerate(rows):
        o_ref[:, b, :] = v.astype(o_ref.dtype)


def _largest_divisor_at_most(n, cap):
    best = 1
    for d in range(1, n + 1):
        if n % d == 0 and d <= cap:
            best = d
    return best


def _choose_channel_tile(C, hw_bytes_per_channel):
    """Keep C whole when small; otherwise pick a lane-aligned tile so one block
    stays <= ~4 MiB (double-buffering fits v5e's 16 MiB / v7x's 32 MiB scoped
    VMEM) and the channel grid axis gives extra parallel steps."""
    if C <= 512:
        return C
    budget = 4 * 1024 * 1024
    candidates = [cb for cb in (512, 384, 256, 128) if C % cb == 0]
    if not candidates:
        return C
    for cb in candidates:                      # largest first
        if cb * hw_bytes_per_channel <= budget:
            return cb
    return candidates[-1]


def _choose_batch_tile(N, per_n_bytes):
    """Group batch elements so each grid step moves >= ~512 KiB (amortize the
    ~0.35 us per-step overhead) while keeping blocks <= ~4 MiB."""
    lo_target = 512 * 1024
    hi_cap = 4 * 1024 * 1024
    per_n_bytes = max(per_n_bytes, 1)
    want = -(-lo_target // per_n_bytes)        # ceil
    cap = max(1, hi_cap // per_n_bytes)
    want = max(1, min(want, cap, N))
    return _largest_divisor_at_most(N, want)


def spatial_pyramid_pooling(feature_maps, num_pools=NUM_POOLS):
    """feature_maps: (N, C, H, W) -> (N, C, sum(num_pools)), max-pool pyramid."""
    assert feature_maps.ndim == 4, "Expected 4D input of (N, C, H, W)"
    N, C, H, W = feature_maps.shape
    sides = [int(sqrt(p)) for p in num_pools]
    assert all(s * s == p for s, p in zip(sides, num_pools))
    total_bins = sum(num_pools)

    # Channels onto the lane axis (lane-dense loads, VPU/sublane reductions).
    x_nhwc = jnp.transpose(feature_maps, (0, 2, 3, 1))          # (N, H, W, C)

    itemsize = feature_maps.dtype.itemsize
    Cb = _choose_channel_tile(C, H * W * itemsize)
    Nb = _choose_batch_tile(N, H * W * Cb * itemsize)

    kernel = functools.partial(_spp_kernel, H=H, W=W, sides=sides)

    out_t = pl.pallas_call(
        kernel,
        out_shape=jax.ShapeDtypeStruct((N, total_bins, C), feature_maps.dtype),
        grid_spec=pltpu.PrefetchScalarGridSpec(
            num_scalar_prefetch=0,
            grid=(N // Nb, C // Cb),
            in_specs=[
                # (Nb, H, W, Cb): last two dims are full W and lane-aligned Cb.
                pl.BlockSpec((Nb, H, W, Cb), lambda n, c: (n, 0, 0, c)),
            ],
            # Lane-dense output block: C last, 21 is the full (sublane) extent.
            out_specs=pl.BlockSpec((Nb, total_bins, Cb), lambda n, c: (n, 0, c)),
        ),
        compiler_params=pltpu.CompilerParams(
            dimension_semantics=("parallel", "parallel"),
        ),
    )(x_nhwc)

    # Tiny wrapper-side transpose back to the module's (N, C, 21) layout.
    return jnp.transpose(out_t, (0, 2, 1))


def _reference_spp(x, num_pools=NUM_POOLS):
    """Plain-JAX reference with the same adaptive-max-pool semantics."""
    N, C, H, W = x.shape
    outs = []
    for p in num_pools:
        s = int(sqrt(p))
        bins = []
        for i in range(s):
            h0 = (i * H) // s
            h1 = -((-(i + 1) * H) // s)
            for j in range(s):
                w0 = (j * W) // s
                w1 = -((-(j + 1) * W) // s)
                bins.append(jnp.max(x[:, :, h0:h1, w0:w1], axis=(2, 3))[..., None])
        outs.append(jnp.concatenate(bins, axis=2))
    return jnp.concatenate(outs, axis=2)


if __name__ == "__main__":
    key = jax.random.PRNGKey(0)

    # Primary case (hierarchical fast path: H, W divisible by 4).
    x = jax.random.normal(key, (2, 4, 16, 16), dtype=jnp.float32)   # (N, C, H, W)
    out = jax.block_until_ready(spatial_pyramid_pooling(x))
    assert out.shape == (2, 4, TOTAL_BINS), out.shape
    assert jnp.allclose(out, _reference_spp(x)), "Pallas SPP mismatch (16x16)"

    # Fallback path (non-nesting bin boundaries: H, W not divisible by 4).
    x2 = jax.random.normal(jax.random.PRNGKey(0), (2, 3, 10, 14), dtype=jnp.float32)
    out2 = jax.block_until_ready(spatial_pyramid_pooling(x2))
    assert out2.shape == (2, 3, TOTAL_BINS), out2.shape
    assert jnp.allclose(out2, _reference_spp(x2)), "Pallas SPP mismatch (10x14)"

    print("KERNEL_OK")
</pallas_src>

<mosaic_0001>
module attributes {stable_mosaic.version = 11 : i64} {
  func.func @_spp_kernel(%arg0: i32, %arg1: i32, %arg2: memref<2x16x16x4xf32, #tpu.memory_space<vmem>>, %arg3: memref<2x21x4xf32, #tpu.memory_space<vmem>>) attributes {dimension_semantics = [#tpu.dimension_semantics<parallel>, #tpu.dimension_semantics<parallel>], iteration_bounds = array<i64: 1, 1>, scalar_prefetch = 0 : i64, scratch_operands = 0 : i64, tpu.core_type = #tpu.core_type<tc>, window_params = [{transform_indices = @transform_0, window_bounds = array<i64: 2, 16, 16, 4>}, {transform_indices = @transform_1, window_bounds = array<i64: 2, 21, 4>}]} {
    %c0 = arith.constant 0 : index
    %c0_0 = arith.constant 0 : index
    %c0_1 = arith.constant 0 : index
    %c0_2 = arith.constant 0 : index
    %0 = vector.load %arg2[%c0, %c0_0, %c0_1, %c0_2] : memref<2x16x16x4xf32, #tpu.memory_space<vmem>>, vector<2x4x4x4xf32>
    %cst = arith.constant dense<0xFF800000> : vector<2x4x4xf32>
    %1 = vector.multi_reduction <maximumf>, %0, %cst [1] : vector<2x4x4x4xf32> to vector<2x4x4xf32>
    %cst_3 = arith.constant dense<0xFF800000> : vector<2x4xf32>
    %2 = vector.multi_reduction <maximumf>, %1, %cst_3 [1] : vector<2x4x4xf32> to vector<2x4xf32>
    %c0_4 = arith.constant 0 : index
    %c0_5 = arith.constant 0 : index
    %c4 = arith.constant 4 : index
    %c0_6 = arith.constant 0 : index
    %3 = vector.load %arg2[%c0_4, %c0_5, %c4, %c0_6] : memref<2x16x16x4xf32, #tpu.memory_space<vmem>>, vector<2x4x4x4xf32>
    %cst_7 = arith.constant dense<0xFF800000> : vector<2x4x4xf32>
    %4 = vector.multi_reduction <maximumf>, %3, %cst_7 [1] : vector<2x4x4x4xf32> to vector<2x4x4xf32>
    %cst_8 = arith.constant dense<0xFF800000> : vector<2x4xf32>
    %5 = vector.multi_reduction <maximumf>, %4, %cst_8 [1] : vector<2x4x4xf32> to vector<2x4xf32>
    %c0_9 = arith.constant 0 : index
    %c0_10 = arith.constant 0 : index
    %c8 = arith.constant 8 : index
    %c0_11 = arith.constant 0 : index
    %6 = vector.load %arg2[%c0_9, %c0_10, %c8, %c0_11] : memref<2x16x16x4xf32, #tpu.memory_space<vmem>>, vector<2x4x4x4xf32>
    %cst_12 = arith.constant dense<0xFF800000> : vector<2x4x4xf32>
    %7 = vector.multi_reduction <maximumf>, %6, %cst_12 [1] : vector<2x4x4x4xf32> to vector<2x4x4xf32>
    %cst_13 = arith.constant dense<0xFF800000> : vector<2x4xf32>
    %8 = vector.multi_reduction <maximumf>, %7, %cst_13 [1] : vector<2x4x4xf32> to vector<2x4xf32>
    %c0_14 = arith.constant 0 : index
    %c0_15 = arith.constant 0 : index
    %c12 = arith.constant 12 : index
    %c0_16 = arith.constant 0 : index
    %9 = vector.load %arg2[%c0_14, %c0_15, %c12, %c0_16] : memref<2x16x16x4xf32, #tpu.memory_space<vmem>>, vector<2x4x4x4xf32>
    %cst_17 = arith.constant dense<0xFF800000> : vector<2x4x4xf32>
    %10 = vector.multi_reduction <maximumf>, %9, %cst_17 [1] : vector<2x4x4x4xf32> to vector<2x4x4xf32>
    %cst_18 = arith.constant dense<0xFF800000> : vector<2x4xf32>
    %11 = vector.multi_reduction <maximumf>, %10, %cst_18 [1] : vector<2x4x4xf32> to vector<2x4xf32>
    %c0_19 = arith.constant 0 : index
    %c4_20 = arith.constant 4 : index
    %c0_21 = arith.constant 0 : index
    %c0_22 = arith.constant 0 : index
    %12 = vector.load %arg2[%c0_19, %c4_20, %c0_21, %c0_22] : memref<2x16x16x4xf32, #tpu.memory_space<vmem>>, vector<2x4x4x4xf32>
    %cst_23 = arith.constant dense<0xFF800000> : vector<2x4x4xf32>
    %13 = vector.multi_reduction <maximumf>, %12, %cst_23 [1] : vector<2x4x4x4xf32> to vector<2x4x4xf32>
    %cst_24 = arith.constant dense<0xFF800000> : vector<2x4xf32>
    %14 = vector.multi_reduction <maximumf>, %13, %cst_24 [1] : vector<2x4x4xf32> to vector<2x4xf32>
    %c0_25 = arith.constant 0 : index
    %c4_26 = arith.constant 4 : index
    %c4_27 = arith.constant 4 : index
    %c0_28 = arith.constant 0 : index
    %15 = vector.load %arg2[%c0_25, %c4_26, %c4_27, %c0_28] : memref<2x16x16x4xf32, #tpu.memory_space<vmem>>, vector<2x4x4x4xf32>
    %cst_29 = arith.constant dense<0xFF800000> : vector<2x4x4xf32>
    %16 = vector.multi_reduction <maximumf>, %15, %cst_29 [1] : vector<2x4x4x4xf32> to vector<2x4x4xf32>
    %cst_30 = arith.constant dense<0xFF800000> : vector<2x4xf32>
    %17 = vector.multi_reduction <maximumf>, %16, %cst_30 [1] : vector<2x4x4xf32> to vector<2x4xf32>
    %c0_31 = arith.constant 0 : index
    %c4_32 = arith.constant 4 : index
    %c8_33 = arith.constant 8 : index
    %c0_34 = arith.constant 0 : index
    %18 = vector.load %arg2[%c0_31, %c4_32, %c8_33, %c0_34] : memref<2x16x16x4xf32, #tpu.memory_space<vmem>>, vector<2x4x4x4xf32>
    %cst_35 = arith.constant dense<0xFF800000> : vector<2x4x4xf32>
    %19 = vector.multi_reduction <maximumf>, %18, %cst_35 [1] : vector<2x4x4x4xf32> to vector<2x4x4xf32>
    %cst_36 = arith.constant dense<0xFF800000> : vector<2x4xf32>
    %20 = vector.multi_reduction <maximumf>, %19, %cst_36 [1] : vector<2x4x4xf32> to vector<2x4xf32>
    %c0_37 = arith.constant 0 : index
    %c4_38 = arith.constant 4 : index
    %c12_39 = arith.constant 12 : index
    %c0_40 = arith.constant 0 : index
    %21 = vector.load %arg2[%c0_37, %c4_38, %c12_39, %c0_40] : memref<2x16x16x4xf32, #tpu.memory_space<vmem>>, vector<2x4x4x4xf32>
    %cst_41 = arith.constant dense<0xFF800000> : vector<2x4x4xf32>
    %22 = vector.multi_reduction <maximumf>, %21, %cst_41 [1] : vector<2x4x4x4xf32> to vector<2x4x4xf32>
    %cst_42 = arith.constant dense<0xFF800000> : vector<2x4xf32>
    %23 = vector.multi_reduction <maximumf>, %22, %cst_42 [1] : vector<2x4x4xf32> to vector<2x4xf32>
    %c0_43 = arith.constant 0 : index
    %c8_44 = arith.constant 8 : index
    %c0_45 = arith.constant 0 : index
    %c0_46 = arith.constant 0 : index
    %24 = vector.load %arg2[%c0_43, %c8_44, %c0_45, %c0_46] : memref<2x16x16x4xf32, #tpu.memory_space<vmem>>, vector<2x4x4x4xf32>
    %cst_47 = arith.constant dense<0xFF800000> : vector<2x4x4xf32>
    %25 = vector.multi_reduction <maximumf>, %24, %cst_47 [1] : vector<2x4x4x4xf32> to vector<2x4x4xf32>
    %cst_48 = arith.constant dense<0xFF800000> : vector<2x4xf32>
    %26 = vector.multi_reduction <maximumf>, %25, %cst_48 [1] : vector<2x4x4xf32> to vector<2x4xf32>
    %c0_49 = arith.constant 0 : index
    %c8_50 = arith.constant 8 : index
    %c4_51 = arith.constant 4 : index
    %c0_52 = arith.constant 0 : index
    %27 = vector.load %arg2[%c0_49, %c8_50, %c4_51, %c0_52] : memref<2x16x16x4xf32, #tpu.memory_space<vmem>>, vector<2x4x4x4xf32>
    %cst_53 = arith.constant dense<0xFF800000> : vector<2x4x4xf32>
    %28 = vector.multi_reduction <maximumf>, %27, %cst_53 [1] : vector<2x4x4x4xf32> to vector<2x4x4xf32>
    %cst_54 = arith.constant dense<0xFF800000> : vector<2x4xf32>
    %29 = vector.multi_reduction <maximumf>, %28, %cst_54 [1] : vector<2x4x4xf32> to vector<2x4xf32>
    %c0_55 = arith.constant 0 : index
    %c8_56 = arith.constant 8 : index
    %c8_57 = arith.constant 8 : index
    %c0_58 = arith.constant 0 : index
    %30 = vector.load %arg2[%c0_55, %c8_56, %c8_57, %c0_58] : memref<2x16x16x4xf32, #tpu.memory_space<vmem>>, vector<2x4x4x4xf32>
    %cst_59 = arith.constant dense<0xFF800000> : vector<2x4x4xf32>
    %31 = vector.multi_reduction <maximumf>, %30, %cst_59 [1] : vector<2x4x4x4xf32> to vector<2x4x4xf32>
    %cst_60 = arith.constant dense<0xFF800000> : vector<2x4xf32>
    %32 = vector.multi_reduction <maximumf>, %31, %cst_60 [1] : vector<2x4x4xf32> to vector<2x4xf32>
    %c0_61 = arith.constant 0 : index
    %c8_62 = arith.constant 8 : index
    %c12_63 = arith.constant 12 : index
    %c0_64 = arith.constant 0 : index
    %33 = vector.load %arg2[%c0_61, %c8_62, %c12_63, %c0_64] : memref<2x16x16x4xf32, #tpu.memory_space<vmem>>, vector<2x4x4x4xf32>
    %cst_65 = arith.constant dense<0xFF800000> : vector<2x4x4xf32>
    %34 = vector.multi_reduction <maximumf>, %33, %cst_65 [1] : vector<2x4x4x4xf32> to vector<2x4x4xf32>
    %cst_66 = arith.constant dense<0xFF800000> : vector<2x4xf32>
    %35 = vector.multi_reduction <maximumf>, %34, %cst_66 [1] : vector<2x4x4xf32> to vector<2x4xf32>
    %c0_67 = arith.constant 0 : index
    %c12_68 = arith.constant 12 : index
    %c0_69 = arith.constant 0 : index
    %c0_70 = arith.constant 0 : index
    %36 = vector.load %arg2[%c0_67, %c12_68, %c0_69, %c0_70] : memref<2x16x16x4xf32, #tpu.memory_space<vmem>>, vector<2x4x4x4xf32>
    %cst_71 = arith.constant dense<0xFF800000> : vector<2x4x4xf32>
    %37 = vector.multi_reduction <maximumf>, %36, %cst_71 [1] : vector<2x4x4x4xf32> to vector<2x4x4xf32>
    %cst_72 = arith.constant dense<0xFF800000> : vector<2x4xf32>
    %38 = vector.multi_reduction <maximumf>, %37, %cst_72 [1] : vector<2x4x4xf32> to vector<2x4xf32>
    %c0_73 = arith.constant 0 : index
    %c12_74 = arith.constant 12 : index
    %c4_75 = arith.constant 4 : index
    %c0_76 = arith.constant 0 : index
    %39 = vector.load %arg2[%c0_73, %c12_74, %c4_75, %c0_76] : memref<2x16x16x4xf32, #tpu.memory_space<vmem>>, vector<2x4x4x4xf32>
    %cst_77 = arith.constant dense<0xFF800000> : vector<2x4x4xf32>
    %40 = vector.multi_reduction <maximumf>, %39, %cst_77 [1] : vector<2x4x4x4xf32> to vector<2x4x4xf32>
    %cst_78 = arith.constant dense<0xFF800000> : vector<2x4xf32>
    %41 = vector.multi_reduction <maximumf>, %40, %cst_78 [1] : vector<2x4x4xf32> to vector<2x4xf32>
    %c0_79 = arith.constant 0 : index
    %c12_80 = arith.constant 12 : index
    %c8_81 = arith.constant 8 : index
    %c0_82 = arith.constant 0 : index
    %42 = vector.load %arg2[%c0_79, %c12_80, %c8_81, %c0_82] : memref<2x16x16x4xf32, #tpu.memory_space<vmem>>, vector<2x4x4x4xf32>
    %cst_83 = arith.constant dense<0xFF800000> : vector<2x4x4xf32>
    %43 = vector.multi_reduction <maximumf>, %42, %cst_83 [1] : vector<2x4x4x4xf32> to vector<2x4x4xf32>
    %cst_84 = arith.constant dense<0xFF800000> : vector<2x4xf32>
    %44 = vector.multi_reduction <maximumf>, %43, %cst_84 [1] : vector<2x4x4xf32> to vector<2x4xf32>
    %c0_85 = arith.constant 0 : index
    %c12_86 = arith.constant 12 : index
    %c12_87 = arith.constant 12 : index
    %c0_88 = arith.constant 0 : index
    %45 = vector.load %arg2[%c0_85, %c12_86, %c12_87, %c0_88] : memref<2x16x16x4xf32, #tpu.memory_space<vmem>>, vector<2x4x4x4xf32>
    %cst_89 = arith.constant dense<0xFF800000> : vector<2x4x4xf32>
    %46 = vector.multi_reduction <maximumf>, %45, %cst_89 [1] : vector<2x4x4x4xf32> to vector<2x4x4xf32>
    %cst_90 = arith.constant dense<0xFF800000> : vector<2x4xf32>
    %47 = vector.multi_reduction <maximumf>, %46, %cst_90 [1] : vector<2x4x4xf32> to vector<2x4xf32>
    %48 = arith.maximumf %2, %5 : vector<2x4xf32>
    %49 = arith.maximumf %14, %17 : vector<2x4xf32>
    %50 = arith.maximumf %48, %49 : vector<2x4xf32>
    %51 = arith.maximumf %8, %11 : vector<2x4xf32>
    %52 = arith.maximumf %20, %23 : vector<2x4xf32>
    %53 = arith.maximumf %51, %52 : vector<2x4xf32>
    %54 = arith.maximumf %26, %29 : vector<2x4xf32>
    %55 = arith.maximumf %38, %41 : vector<2x4xf32>
    %56 = arith.maximumf %54, %55 : vector<2x4xf32>
    %57 = arith.maximumf %32, %35 : vector<2x4xf32>
    %58 = arith.maximumf %44, %47 : vector<2x4xf32>
    %59 = arith.maximumf %57, %58 : vector<2x4xf32>
    %60 = arith.maximumf %50, %53 : vector<2x4xf32>
    %61 = arith.maximumf %56, %59 : vector<2x4xf32>
    %62 = arith.maximumf %60, %61 : vector<2x4xf32>
    %c0_91 = arith.constant 0 : index
    %c0_92 = arith.constant 0 : index
    %c0_93 = arith.constant 0 : index
    %63 = vector.load %arg3[%c0_91, %c0_92, %c0_93] : memref<2x21x4xf32, #tpu.memory_space<vmem>>, vector<2x1x4xf32>
    %64 = vector.shape_cast %63 : vector<2x1x4xf32> to vector<2x4xf32>
    %65 = vector.shape_cast %62 : vector<2x4xf32> to vector<2x1x4xf32>
    tpu.vector_store %arg3[%c0_91, %c0_92, %c0_93], %65 {strides = array<i32>} : memref<2x21x4xf32, #tpu.memory_space<vmem>>, vector<2x1x4xf32>,
    %c0_94 = arith.constant 0 : index
    %c1 = arith.constant 1 : index
    %c0_95 = arith.constant 0 : index
    %66 = vector.load %arg3[%c0_94, %c1, %c0_95] : memref<2x21x4xf32, #tpu.memory_space<vmem>>, vector<2x1x4xf32>
    %67 = vector.shape_cast %66 : vector<2x1x4xf32> to vector<2x4xf32>
    %68 = vector.shape_cast %50 : vector<2x4xf32> to vector<2x1x4xf32>
    tpu.vector_store %arg3[%c0_94, %c1, %c0_95], %68 {strides = array<i32>} : memref<2x21x4xf32, #tpu.memory_space<vmem>>, vector<2x1x4xf32>,
    %c0_96 = arith.constant 0 : index
    %c2 = arith.constant 2 : index
    %c0_97 = arith.constant 0 : index
    %69 = vector.load %arg3[%c0_96, %c2, %c0_97] : memref<2x21x4xf32, #tpu.memory_space<vmem>>, vector<2x1x4xf32>
    %70 = vector.shape_cast %69 : vector<2x1x4xf32> to vector<2x4xf32>
    %71 = vector.shape_cast %53 : vector<2x4xf32> to vector<2x1x4xf32>
    tpu.vector_store %arg3[%c0_96, %c2, %c0_97], %71 {strides = array<i32>} : memref<2x21x4xf32, #tpu.memory_space<vmem>>, vector<2x1x4xf32>,
    %c0_98 = arith.constant 0 : index
    %c3 = arith.constant 3 : index
    %c0_99 = arith.constant 0 : index
    %72 = vector.load %arg3[%c0_98, %c3, %c0_99] : memref<2x21x4xf32, #tpu.memory_space<vmem>>, vector<2x1x4xf32>
    %73 = vector.shape_cast %72 : vector<2x1x4xf32> to vector<2x4xf32>
    %74 = vector.shape_cast %56 : vector<2x4xf32> to vector<2x1x4xf32>
    tpu.vector_store %arg3[%c0_98, %c3, %c0_99], %74 {strides = array<i32>} : memref<2x21x4xf32, #tpu.memory_space<vmem>>, vector<2x1x4xf32>,
    %c0_100 = arith.constant 0 : index
    %c4_101 = arith.constant 4 : index
    %c0_102 = arith.constant 0 : index
    %75 = vector.load %arg3[%c0_100, %c4_101, %c0_102] : memref<2x21x4xf32, #tpu.memory_space<vmem>>, vector<2x1x4xf32>
    %76 = vector.shape_cast %75 : vector<2x1x4xf32> to vector<2x4xf32>
    %77 = vector.shape_cast %59 : vector<2x4xf32> to vector<2x1x4xf32>
    tpu.vector_store %arg3[%c0_100, %c4_101, %c0_102], %77 {strides = array<i32>} : memref<2x21x4xf32, #tpu.memory_space<vmem>>, vector<2x1x4xf32>,
    %c0_103 = arith.constant 0 : index
    %c5 = arith.constant 5 : index
    %c0_104 = arith.constant 0 : index
    %78 = vector.load %arg3[%c0_103, %c5, %c0_104] : memref<2x21x4xf32, #tpu.memory_space<vmem>>, vector<2x1x4xf32>
    %79 = vector.shape_cast %78 : vector<2x1x4xf32> to vector<2x4xf32>
    %80 = vector.shape_cast %2 : vector<2x4xf32> to vector<2x1x4xf32>
    tpu.vector_store %arg3[%c0_103, %c5, %c0_104], %80 {strides = array<i32>} : memref<2x21x4xf32, #tpu.memory_space<vmem>>, vector<2x1x4xf32>,
    %c0_105 = arith.constant 0 : index
    %c6 = arith.constant 6 : index
    %c0_106 = arith.constant 0 : index
    %81 = vector.load %arg3[%c0_105, %c6, %c0_106] : memref<2x21x4xf32, #tpu.memory_space<vmem>>, vector<2x1x4xf32>
    %82 = vector.shape_cast %81 : vector<2x1x4xf32> to vector<2x4xf32>
    %83 = vector.shape_cast %5 : vector<2x4xf32> to vector<2x1x4xf32>
    tpu.vector_store %arg3[%c0_105, %c6, %c0_106], %83 {strides = array<i32>} : memref<2x21x4xf32, #tpu.memory_space<vmem>>, vector<2x1x4xf32>,
    %c0_107 = arith.constant 0 : index
    %c7 = arith.constant 7 : index
    %c0_108 = arith.constant 0 : index
    %84 = vector.load %arg3[%c0_107, %c7, %c0_108] : memref<2x21x4xf32, #tpu.memory_space<vmem>>, vector<2x1x4xf32>
    %85 = vector.shape_cast %84 : vector<2x1x4xf32> to vector<2x4xf32>
    %86 = vector.shape_cast %8 : vector<2x4xf32> to vector<2x1x4xf32>
    tpu.vector_store %arg3[%c0_107, %c7, %c0_108], %86 {strides = array<i32>} : memref<2x21x4xf32, #tpu.memory_space<vmem>>, vector<2x1x4xf32>,
    %c0_109 = arith.constant 0 : index
    %c8_110 = arith.constant 8 : index
    %c0_111 = arith.constant 0 : index
    %87 = vector.load %arg3[%c0_109, %c8_110, %c0_111] : memref<2x21x4xf32, #tpu.memory_space<vmem>>, vector<2x1x4xf32>
    %88 = vector.shape_cast %87 : vector<2x1x4xf32> to vector<2x4xf32>
    %89 = vector.shape_cast %11 : vector<2x4xf32> to vector<2x1x4xf32>
    tpu.vector_store %arg3[%c0_109, %c8_110, %c0_111], %89 {strides = array<i32>} : memref<2x21x4xf32, #tpu.memory_space<vmem>>, vector<2x1x4xf32>,
    %c0_112 = arith.constant 0 : index
    %c9 = arith.constant 9 : index
    %c0_113 = arith.constant 0 : index
    %90 = vector.load %arg3[%c0_112, %c9, %c0_113] : memref<2x21x4xf32, #tpu.memory_space<vmem>>, vector<2x1x4xf32>
    %91 = vector.shape_cast %90 : vector<2x1x4xf32> to vector<2x4xf32>
    %92 = vector.shape_cast %14 : vector<2x4xf32> to vector<2x1x4xf32>
    tpu.vector_store %arg3[%c0_112, %c9, %c0_113], %92 {strides = array<i32>} : memref<2x21x4xf32, #tpu.memory_space<vmem>>, vector<2x1x4xf32>,
    %c0_114 = arith.constant 0 : index
    %c10 = arith.constant 10 : index
    %c0_115 = arith.constant 0 : index
    %93 = vector.load %arg3[%c0_114, %c10, %c0_115] : memref<2x21x4xf32, #tpu.memory_space<vmem>>, vector<2x1x4xf32>
    %94 = vector.shape_cast %93 : vector<2x1x4xf32> to vector<2x4xf32>
    %95 = vector.shape_cast %17 : vector<2x4xf32> to vector<2x1x4xf32>
    tpu.vector_store %arg3[%c0_114, %c10, %c0_115], %95 {strides = array<i32>} : memref<2x21x4xf32, #tpu.memory_space<vmem>>, vector<2x1x4xf32>,
    %c0_116 = arith.constant 0 : index
    %c11 = arith.constant 11 : index
    %c0_117 = arith.constant 0 : index
    %96 = vector.load %arg3[%c0_116, %c11, %c0_117] : memref<2x21x4xf32, #tpu.memory_space<vmem>>, vector<2x1x4xf32>
    %97 = vector.shape_cast %96 : vector<2x1x4xf32> to vector<2x4xf32>
    %98 = vector.shape_cast %20 : vector<2x4xf32> to vector<2x1x4xf32>
    tpu.vector_store %arg3[%c0_116, %c11, %c0_117], %98 {strides = array<i32>} : memref<2x21x4xf32, #tpu.memory_space<vmem>>, vector<2x1x4xf32>,
    %c0_118 = arith.constant 0 : index
    %c12_119 = arith.constant 12 : index
    %c0_120 = arith.constant 0 : index
    %99 = vector.load %arg3[%c0_118, %c12_119, %c0_120] : memref<2x21x4xf32, #tpu.memory_space<vmem>>, vector<2x1x4xf32>
    %100 = vector.shape_cast %99 : vector<2x1x4xf32> to vector<2x4xf32>
    %101 = vector.shape_cast %23 : vector<2x4xf32> to vector<2x1x4xf32>
    tpu.vector_store %arg3[%c0_118, %c12_119, %c0_120], %101 {strides = array<i32>} : memref<2x21x4xf32, #tpu.memory_space<vmem>>, vector<2x1x4xf32>,
    %c0_121 = arith.constant 0 : index
    %c13 = arith.constant 13 : index
    %c0_122 = arith.constant 0 : index
    %102 = vector.load %arg3[%c0_121, %c13, %c0_122] : memref<2x21x4xf32, #tpu.memory_space<vmem>>, vector<2x1x4xf32>
    %103 = vector.shape_cast %102 : vector<2x1x4xf32> to vector<2x4xf32>
    %104 = vector.shape_cast %26 : vector<2x4xf32> to vector<2x1x4xf32>
    tpu.vector_store %arg3[%c0_121, %c13, %c0_122], %104 {strides = array<i32>} : memref<2x21x4xf32, #tpu.memory_space<vmem>>, vector<2x1x4xf32>,
    %c0_123 = arith.constant 0 : index
    %c14 = arith.constant 14 : index
    %c0_124 = arith.constant 0 : index
    %105 = vector.load %arg3[%c0_123, %c14, %c0_124] : memref<2x21x4xf32, #tpu.memory_space<vmem>>, vector<2x1x4xf32>
    %106 = vector.shape_cast %105 : vector<2x1x4xf32> to vector<2x4xf32>
    %107 = vector.shape_cast %29 : vector<2x4xf32> to vector<2x1x4xf32>
    tpu.vector_store %arg3[%c0_123, %c14, %c0_124], %107 {strides = array<i32>} : memref<2x21x4xf32, #tpu.memory_space<vmem>>, vector<2x1x4xf32>,
    %c0_125 = arith.constant 0 : index
    %c15 = arith.constant 15 : index
    %c0_126 = arith.constant 0 : index
    %108 = vector.load %arg3[%c0_125, %c15, %c0_126] : memref<2x21x4xf32, #tpu.memory_space<vmem>>, vector<2x1x4xf32>
    %109 = vector.shape_cast %108 : vector<2x1x4xf32> to vector<2x4xf32>
    %110 = vector.shape_cast %32 : vector<2x4xf32> to vector<2x1x4xf32>
    tpu.vector_store %arg3[%c0_125, %c15, %c0_126], %110 {strides = array<i32>} : memref<2x21x4xf32, #tpu.memory_space<vmem>>, vector<2x1x4xf32>,
    %c0_127 = arith.constant 0 : index
    %c16 = arith.constant 16 : index
    %c0_128 = arith.constant 0 : index
    %111 = vector.load %arg3[%c0_127, %c16, %c0_128] : memref<2x21x4xf32, #tpu.memory_space<vmem>>, vector<2x1x4xf32>
    %112 = vector.shape_cast %111 : vector<2x1x4xf32> to vector<2x4xf32>
    %113 = vector.shape_cast %35 : vector<2x4xf32> to vector<2x1x4xf32>
    tpu.vector_store %arg3[%c0_127, %c16, %c0_128], %113 {strides = array<i32>} : memref<2x21x4xf32, #tpu.memory_space<vmem>>, vector<2x1x4xf32>,
    %c0_129 = arith.constant 0 : index
    %c17 = arith.constant 17 : index
    %c0_130 = arith.constant 0 : index
    %114 = vector.load %arg3[%c0_129, %c17, %c0_130] : memref<2x21x4xf32, #tpu.memory_space<vmem>>, vector<2x1x4xf32>
    %115 = vector.shape_cast %114 : vector<2x1x4xf32> to vector<2x4xf32>
    %116 = vector.shape_cast %38 : vector<2x4xf32> to vector<2x1x4xf32>
    tpu.vector_store %arg3[%c0_129, %c17, %c0_130], %116 {strides = array<i32>} : memref<2x21x4xf32, #tpu.memory_space<vmem>>, vector<2x1x4xf32>,
    %c0_131 = arith.constant 0 : index
    %c18 = arith.constant 18 : index
    %c0_132 = arith.constant 0 : index
    %117 = vector.load %arg3[%c0_131, %c18, %c0_132] : memref<2x21x4xf32, #tpu.memory_space<vmem>>, vector<2x1x4xf32>
    %118 = vector.shape_cast %117 : vector<2x1x4xf32> to vector<2x4xf32>
    %119 = vector.shape_cast %41 : vector<2x4xf32> to vector<2x1x4xf32>
    tpu.vector_store %arg3[%c0_131, %c18, %c0_132], %119 {strides = array<i32>} : memref<2x21x4xf32, #tpu.memory_space<vmem>>, vector<2x1x4xf32>,
    %c0_133 = arith.constant 0 : index
    %c19 = arith.constant 19 : index
    %c0_134 = arith.constant 0 : index
    %120 = vector.load %arg3[%c0_133, %c19, %c0_134] : memref<2x21x4xf32, #tpu.memory_space<vmem>>, vector<2x1x4xf32>
    %121 = vector.shape_cast %120 : vector<2x1x4xf32> to vector<2x4xf32>
    %122 = vector.shape_cast %44 : vector<2x4xf32> to vector<2x1x4xf32>
    tpu.vector_store %arg3[%c0_133, %c19, %c0_134], %122 {strides = array<i32>} : memref<2x21x4xf32, #tpu.memory_space<vmem>>, vector<2x1x4xf32>,
    %c0_135 = arith.constant 0 : index
    %c20 = arith.constant 20 : index
    %c0_136 = arith.constant 0 : index
    %123 = vector.load %arg3[%c0_135, %c20, %c0_136] : memref<2x21x4xf32, #tpu.memory_space<vmem>>, vector<2x1x4xf32>
    %124 = vector.shape_cast %123 : vector<2x1x4xf32> to vector<2x4xf32>
    %125 = vector.shape_cast %47 : vector<2x4xf32> to vector<2x1x4xf32>
    tpu.vector_store %arg3[%c0_135, %c20, %c0_136], %125 {strides = array<i32>} : memref<2x21x4xf32, #tpu.memory_space<vmem>>, vector<2x1x4xf32>,
    return
  }
  func.func @transform_0(%arg0: i32, %arg1: i32) -> (i32, i32, i32, i32) {
    %c0_i32 = arith.constant 0 : i32
    %c0_i32_0 = arith.constant 0 : i32
    %c0_i32_1 = arith.constant 0 : i32
    return %arg0, %c0_i32, %c0_i32_0, %arg1 : i32, i32, i32, i32
  }
  func.func @transform_1(%arg0: i32, %arg1: i32) -> (i32, i32, i32) {
    %c0_i32 = arith.constant 0 : i32
    %c0_i32_0 = arith.constant 0 : i32
    return %arg0, %c0_i32, %arg1 : i32, i32, i32
  }
}

</mosaic_0001>

<llo_original>
// kernel: tpu_custom_call.1
$region0: #{tpu_custom_call.1}
  #allocation0 [shape = 'u32[]', space=smem, size = 0x4, offset = 0x4, fixed_abs, tag = 'smem constant byte address 0x4 - core index']
  #allocation1 [shape = 'u32[144,128]{1,0:T(1,128)}', space=vmem, size = 0x12000, scoped, tag = 'internal scratch']
  %s0 = inlined_call_operand.vmem [shape: f32[2,16,16,4], index: 0, kind: input, shape index: {}]
  %s1 = inlined_call_operand.vmem [shape: f32[2,21,4], index: 1, kind: output, shape index: {}]
  %s2 = sld [smem:[#allocation0]]
  $region14: #{tpu_custom_call.1} parent=0
    _
  %s4 = ssub.s32 1, %s2
  %s5 = scalar_select 0, %s4, %s2
  // Predicated region
  $region2: #{tpu_custom_call.1} parent=0 // pred_check
    _
  $region3: #{tpu_custom_call.1} parent=0 // pred_check_branch
    %7 = sbr.rel (0) target = $region5
  $region4: #{tpu_custom_call.1} parent=0 // pred_region
    _
  $region5: #{tpu_custom_call.1} parent=0 // pred_fallthru
    _
  %v8 = vld [vmem:[%s0] sm:$0xf]
  %v9 = vld [vmem:[%s0 + $0x10] sm:$0xf]
  %v10 = vld [vmem:[%s0 + $0x20] sm:$0xf]
  %v11 = vld [vmem:[%s0 + $0x30] sm:$0xf]
  %v12 = vld [vmem:[%s0 + $0x100] sm:$0xf]
  %v13 = vld [vmem:[%s0 + $0x110] sm:$0xf]
  %v14 = vld [vmem:[%s0 + $0x120] sm:$0xf]
  %v15 = vld [vmem:[%s0 + $0x130] sm:$0xf]
  %vm16 = vcmask 27648
  %v17 = vsel %vm16, %v8, -inf
  %v18 = vsel %vm16, %v9, -inf
  %v19 = vsel %vm16, %v10, -inf
  %v20 = vmax.f32 %v17, %v19
  %v21 = vsel %vm16, %v11, -inf
  %v22 = vmax.f32 %v18, %v21
  %v23 = vmax.f32 %v20, %v22
  %v24 = vsel %vm16, %v12, -inf
  %v25 = vsel %vm16, %v13, -inf
  %v26 = vsel %vm16, %v14, -inf
  %v27 = vmax.f32 %v24, %v26
  %v28 = vsel %vm16, %v15, -inf
  %v29 = vmax.f32 %v25, %v28
  %v30 = vmax.f32 %v27, %v29
  %v31 = vsel %vm16, %v23, -inf
  %v32 = vrot.slane %v31, 4
  %v33 = vmax.f32 %v31, %v32
  %v34 = vrot.slane %v33, 2
  %v35 = vmax.f32 %v33, %v34
  %v36 = vrot.slane %v35, 1
  %v37 = vmax.f32 %v35, %v36
  %v38 = vsel %vm16, %v30, -inf
  %v39 = vrot.slane %v38, 4
  %v40 = vmax.f32 %v38, %v39
  %v41 = vrot.slane %v40, 2
  %v42 = vmax.f32 %v40, %v41
  %v43 = vrot.slane %v42, 1
  %v44 = vmax.f32 %v42, %v43
  %v45 = vld [vmem:[%s0 + $0x4] sm:$0xf]
  %v46 = vld [vmem:[%s0 + $0x14] sm:$0xf]
  %v47 = vld [vmem:[%s0 + $0x24] sm:$0xf]
  %v48 = vld [vmem:[%s0 + $0x34] sm:$0xf]
  %v49 = vld [vmem:[%s0 + $0x104] sm:$0xf]
  %v50 = vld [vmem:[%s0 + $0x114] sm:$0xf]
  %v51 = vld [vmem:[%s0 + $0x124] sm:$0xf]
  %v52 = vld [vmem:[%s0 + $0x134] sm:$0xf]
  %v53 = vsel %vm16, %v45, -inf
  %v54 = vsel %vm16, %v46, -inf
  %v55 = vsel %vm16, %v47, -inf
  %v56 = vmax.f32 %v53, %v55
  %v57 = vsel %vm16, %v48, -inf
  %v58 = vmax.f32 %v54, %v57
  %v59 = vmax.f32 %v56, %v58
  %v60 = vsel %vm16, %v49, -inf
  %v61 = vsel %vm16, %v50, -inf
  %v62 = vsel %vm16, %v51, -inf
  %v63 = vmax.f32 %v60, %v62
  %v64 = vsel %vm16, %v52, -inf
  %v65 = vmax.f32 %v61, %v64
  %v66 = vmax.f32 %v63, %v65
  %v67 = vsel %vm16, %v59, -inf
  %v68 = vrot.slane %v67, 4
  %v69 = vmax.f32 %v67, %v68
  %v70 = vrot.slane %v69, 2
  %v71 = vmax.f32 %v69, %v70
  %v72 = vrot.slane %v71, 1
  %v73 = vmax.f32 %v71, %v72
  %v74 = vsel %vm16, %v66, -inf
  %v75 = vrot.slane %v74, 4
  %v76 = vmax.f32 %v74, %v75
  %v77 = vrot.slane %v76, 2
  %v78 = vmax.f32 %v76, %v77
  %v79 = vrot.slane %v78, 1
  %v80 = vmax.f32 %v78, %v79
  %v81 = vld [vmem:[%s0 + $0x8] sm:$0xf]
  %v82 = vld [vmem:[%s0 + $0x18] sm:$0xf]
  %v83 = vld [vmem:[%s0 + $0x28] sm:$0xf]
  %v84 = vld [vmem:[%s0 + $0x38] sm:$0xf]
  %v85 = vld [vmem:[%s0 + $0x108] sm:$0xf]
  %v86 = vld [vmem:[%s0 + $0x118] sm:$0xf]
  %v87 = vld [vmem:[%s0 + $0x128] sm:$0xf]
  %v88 = vld [vmem:[%s0 + $0x138] sm:$0xf]
  %v89 = vsel %vm16, %v81, -inf
  %v90 = vsel %vm16, %v82, -inf
  %v91 = vsel %vm16, %v83, -inf
  %v92 = vmax.f32 %v89, %v91
  %v93 = vsel %vm16, %v84, -inf
  %v94 = vmax.f32 %v90, %v93
  %v95 = vmax.f32 %v92, %v94
  %v96 = vsel %vm16, %v85, -inf
  %v97 = vsel %vm16, %v86, -inf
  %v98 = vsel %vm16, %v87, -inf
  %v99 = vmax.f32 %v96, %v98
  %v100 = vsel %vm16, %v88, -inf
  %v101 = vmax.f32 %v97, %v100
  %v102 = vmax.f32 %v99, %v101
  %v103 = vsel %vm16, %v95, -inf
  %v104 = vrot.slane %v103, 4
  %v105 = vmax.f32 %v103, %v104
  %v106 = vrot.slane %v105, 2
  %v107 = vmax.f32 %v105, %v106
  %v108 = vrot.slane %v107, 1
  %v109 = vmax.f32 %v107, %v108
  %v110 = vsel %vm16, %v102, -inf
  %v111 = vrot.slane %v110, 4
  %v112 = vmax.f32 %v110, %v111
  %v113 = vrot.slane %v112, 2
  %v114 = vmax.f32 %v112, %v113
  %v115 = vrot.slane %v114, 1
  %v116 = vmax.f32 %v114, %v115
  %v117 = vld [vmem:[%s0 + $0xc] sm:$0xf]
  %v118 = vld [vmem:[%s0 + $0x1c] sm:$0xf]
  %v119 = vld [vmem:[%s0 + $0x2c] sm:$0xf]
  %v120 = vld [vmem:[%s0 + $0x3c] sm:$0xf]
  %v121 = vld [vmem:[%s0 + $0x10c] sm:$0xf]
  %v122 = vld [vmem:[%s0 + $0x11c] sm:$0xf]
  %v123 = vld [vmem:[%s0 + $0x12c] sm:$0xf]
  %v124 = vld [vmem:[%s0 + $0x13c] sm:$0xf]
  %v125 = vsel %vm16, %v117, -inf
  %v126 = vsel %vm16, %v118, -inf
  %v127 = vsel %vm16, %v119, -inf
  %v128 = vmax.f32 %v125, %v127
  %v129 = vsel %vm16, %v120, -inf
  %v130 = vmax.f32 %v126, %v129
  %v131 = vmax.f32 %v128, %v130
  %v132 = vsel %vm16, %v121, -inf
  %v133 = vsel %vm16, %v122, -inf
  %v134 = vsel %vm16, %v123, -inf
  %v135 = vmax.f32 %v132, %v134
  %v136 = vsel %vm16, %v124, -inf
  %v137 = vmax.f32 %v133, %v136
  %v138 = vmax.f32 %v135, %v137
  %v139 = vsel %vm16, %v131, -inf
  %v140 = vrot.slane %v139, 4
  %v141 = vmax.f32 %v139, %v140
  %v142 = vrot.slane %v141, 2
  %v143 = vmax.f32 %v141, %v142
  %v144 = vrot.slane %v143, 1
  %v145 = vmax.f32 %v143, %v144
  %v146 = vsel %vm16, %v138, -inf
  %v147 = vrot.slane %v146, 4
  %v148 = vmax.f32 %v146, %v147
  %v149 = vrot.slane %v148, 2
  %v150 = vmax.f32 %v148, %v149
  %v151 = vrot.slane %v150, 1
  %v152 = vmax.f32 %v150, %v151
  %s153 = scalar_lea.vmem %s0, 64
  %v154 = vld [vmem:[%s153] sm:$0xf]
  %v155 = vld [vmem:[%s153 + $0x10] sm:$0xf]
  %v156 = vld [vmem:[%s153 + $0x20] sm:$0xf]
  %v157 = vld [vmem:[%s153 + $0x30] sm:$0xf]
  %v158 = vld [vmem:[%s153 + $0x100] sm:$0xf]
  %v159 = vld [vmem:[%s153 + $0x110] sm:$0xf]
  %v160 = vld [vmem:[%s153 + $0x120] sm:$0xf]
  %v161 = vld [vmem:[%s153 + $0x130] sm:$0xf]
  %v162 = vsel %vm16, %v154, -inf
  %v163 = vsel %vm16, %v155, -inf
  %v164 = vsel %vm16, %v156, -inf
  %v165 = vmax.f32 %v162, %v164
  %v166 = vsel %vm16, %v157, -inf
  %v167 = vmax.f32 %v163, %v166
  %v168 = vmax.f32 %v165, %v167
  %v169 = vsel %vm16, %v158, -inf
  %v170 = vsel %vm16, %v159, -inf
  %v171 = vsel %vm16, %v160, -inf
  %v172 = vmax.f32 %v169, %v171
  %v173 = vsel %vm16, %v161, -inf
  %v174 = vmax.f32 %v170, %v173
  %v175 = vmax.f32 %v172, %v174
  %v176 = vsel %vm16, %v168, -inf
  %v177 = vrot.slane %v176, 4
  %v178 = vmax.f32 %v176, %v177
  %v179 = vrot.slane %v178, 2
  %v180 = vmax.f32 %v178, %v179
  %v181 = vrot.slane %v180, 1
  %v182 = vmax.f32 %v180, %v181
  %v183 = vsel %vm16, %v175, -inf
  %v184 = vrot.slane %v183, 4
  %v185 = vmax.f32 %v183, %v184
  %v186 = vrot.slane %v185, 2
  %v187 = vmax.f32 %v185, %v186
  %v188 = vrot.slane %v187, 1
  %v189 = vmax.f32 %v187, %v188
  %v190 = vld [vmem:[%s153 + $0x4] sm:$0xf]
  %v191 = vld [vmem:[%s153 + $0x14] sm:$0xf]
  %v192 = vld [vmem:[%s153 + $0x24] sm:$0xf]
  %v193 = vld [vmem:[%s153 + $0x34] sm:$0xf]
  %v194 = vld [vmem:[%s153 + $0x104] sm:$0xf]
  %v195 = vld [vmem:[%s153 + $0x114] sm:$0xf]
  %v196 = vld [vmem:[%s153 + $0x124] sm:$0xf]
  %v197 = vld [vmem:[%s153 + $0x134] sm:$0xf]
  %v198 = vsel %vm16, %v190, -inf
  %v199 = vsel %vm16, %v191, -inf
  %v200 = vsel %vm16, %v192, -inf
  %v201 = vmax.f32 %v198, %v200
  %v202 = vsel %vm16, %v193, -inf
  %v203 = vmax.f32 %v199, %v202
  %v204 = vmax.f32 %v201, %v203
  %v205 = vsel %vm16, %v194, -inf
  %v206 = vsel %vm16, %v195, -inf
  %v207 = vsel %vm16, %v196, -inf
  %v208 = vmax.f32 %v205, %v207
  %v209 = vsel %vm16, %v197, -inf
  %v210 = vmax.f32 %v206, %v209
  %v211 = vmax.f32 %v208, %v210
  %v212 = vsel %vm16, %v204, -inf
  %v213 = vrot.slane %v212, 4
  %v214 = vmax.f32 %v212, %v213
  %v215 = vrot.slane %v214, 2
  %v216 = vmax.f32 %v214, %v215
  %v217 = vrot.slane %v216, 1
  %v218 = vmax.f32 %v216, %v217
  %v219 = vsel %vm16, %v211, -inf
  %v220 = vrot.slane %v219, 4
  %v221 = vmax.f32 %v219, %v220
  %v222 = vrot.slane %v221, 2
  %v223 = vmax.f32 %v221, %v222
  %v224 = vrot.slane %v223, 1
  %v225 = vmax.f32 %v223, %v224
  %v226 = vld [vmem:[%s153 + $0x8] sm:$0xf]
  %v227 = vld [vmem:[%s153 + $0x18] sm:$0xf]
  %v228 = vld [vmem:[%s153 + $0x28] sm:$0xf]
  %v229 = vld [vmem:[%s153 + $0x38] sm:$0xf]
  %v230 = vld [vmem:[%s153 + $0x108] sm:$0xf]
  %v231 = vld [vmem:[%s153 + $0x118] sm:$0xf]
  %v232 = vld [vmem:[%s153 + $0x128] sm:$0xf]
  %v233 = vld [vmem:[%s153 + $0x138] sm:$0xf]
  %v234 = vsel %vm16, %v226, -inf
  %v235 = vsel %vm16, %v227, -inf
  %v236 = vsel %vm16, %v228, -inf
  %v237 = vmax.f32 %v234, %v236
  %v238 = vsel %vm16, %v229, -inf
  %v239 = vmax.f32 %v235, %v238
  %v240 = vmax.f32 %v237, %v239
  %v241 = vsel %vm16, %v230, -inf
  %v242 = vsel %vm16, %v231, -inf
  %v243 = vsel %vm16, %v232, -inf
  %v244 = vmax.f32 %v241, %v243
  %v245 = vsel %vm16, %v233, -inf
  %v246 = vmax.f32 %v242, %v245
  %v247 = vmax.f32 %v244, %v246
  %v248 = vsel %vm16, %v240, -inf
  %v249 = vrot.slane %v248, 4
  %v250 = vmax.f32 %v248, %v249
  %v251 = vrot.slane %v250, 2
  %v252 = vmax.f32 %v250, %v251
  %v253 = vrot.slane %v252, 1
  %v254 = vmax.f32 %v252, %v253
  %v255 = vsel %vm16, %v247, -inf
  %v256 = vrot.slane %v255, 4
  %v257 = vmax.f32 %v255, %v256
  %v258 = vrot.slane %v257, 2
  %v259 = vmax.f32 %v257, %v258
  %v260 = vrot.slane %v259, 1
  %v261 = vmax.f32 %v259, %v260
  %v262 = vld [vmem:[%s153 + $0xc] sm:$0xf]
  %v263 = vld [vmem:[%s153 + $0x1c] sm:$0xf]
  %v264 = vld [vmem:[%s153 + $0x2c] sm:$0xf]
  %v265 = vld [vmem:[%s153 + $0x3c] sm:$0xf]
  %v266 = vld [vmem:[%s153 + $0x10c] sm:$0xf]
  %v267 = vld [vmem:[%s153 + $0x11c] sm:$0xf]
  %v268 = vld [vmem:[%s153 + $0x12c] sm:$0xf]
  %v269 = vld [vmem:[%s153 + $0x13c] sm:$0xf]
  %v270 = vsel %vm16, %v262, -inf
  %v271 = vsel %vm16, %v263, -inf
  %v272 = vsel %vm16, %v264, -inf
  %v273 = vmax.f32 %v270, %v272
  %v274 = vsel %vm16, %v265, -inf
  %v275 = vmax.f32 %v271, %v274
  %v276 = vmax.f32 %v273, %v275
  %v277 = vsel %vm16, %v266, -inf
  %v278 = vsel %vm16, %v267, -inf
  %v279 = vsel %vm16, %v268, -inf
  %v280 = vmax.f32 %v277, %v279
  %v281 = vsel %vm16, %v269, -inf
  %v282 = vmax.f32 %v278, %v281
  %v283 = vmax.f32 %v280, %v282
  %v284 = vsel %vm16, %v276, -inf
  %v285 = vrot.slane %v284, 4
  %v286 = vmax.f32 %v284, %v285
  %v287 = vrot.slane %v286, 2
  %v288 = vmax.f32 %v286, %v287
  %v289 = vrot.slane %v288, 1
  %v290 = vmax.f32 %v288, %v289
  %v291 = vsel %vm16, %v283, -inf
  %v292 = vrot.slane %v291, 4
  %v293 = vmax.f32 %v291, %v292
  %v294 = vrot.slane %v293, 2
  %v295 = vmax.f32 %v293, %v294
  %v296 = vrot.slane %v295, 1
  %v297 = vmax.f32 %v295, %v296
  %s298 = scalar_lea.vmem %s0, 128
  %v299 = vld [vmem:[%s298] sm:$0xf]
  %v300 = vld [vmem:[%s298 + $0x10] sm:$0xf]
  %v301 = vld [vmem:[%s298 + $0x20] sm:$0xf]
  %v302 = vld [vmem:[%s298 + $0x30] sm:$0xf]
  %v303 = vld [vmem:[%s298 + $0x100] sm:$0xf]
  %v304 = vld [vmem:[%s298 + $0x110] sm:$0xf]
  %v305 = vld [vmem:[%s298 + $0x120] sm:$0xf]
  %v306 = vld [vmem:[%s298 + $0x130] sm:$0xf]
  %v307 = vsel %vm16, %v299, -inf
  %v308 = vsel %vm16, %v300, -inf
  %v309 = vsel %vm16, %v301, -inf
  %v310 = vmax.f32 %v307, %v309
  %v311 = vsel %vm16, %v302, -inf
  %v312 = vmax.f32 %v308, %v311
  %v313 = vmax.f32 %v310, %v312
  %v314 = vsel %vm16, %v303, -inf
  %v315 = vsel %vm16, %v304, -inf
  %v316 = vsel %vm16, %v305, -inf
  %v317 = vmax.f32 %v314, %v316
  %v318 = vsel %vm16, %v306, -inf
  %v319 = vmax.f32 %v315, %v318
  %v320 = vmax.f32 %v317, %v319
  %v321 = vsel %vm16, %v313, -inf
  %v322 = vrot.slane %v321, 4
  %v323 = vmax.f32 %v321, %v322
  %v324 = vrot.slane %v323, 2
  %v325 = vmax.f32 %v323, %v324
  %v326 = vrot.slane %v325, 1
  %v327 = vmax.f32 %v325, %v326
  %v328 = vsel %vm16, %v320, -inf
  %v329 = vrot.slane %v328, 4
  %v330 = vmax.f32 %v328, %v329
  %v331 = vrot.slane %v330, 2
  %v332 = vmax.f32 %v330, %v331
  %v333 = vrot.slane %v332, 1
  %v334 = vmax.f32 %v332, %v333
  %v335 = vld [vmem:[%s298 + $0x4] sm:$0xf]
  %v336 = vld [vmem:[%s298 + $0x14] sm:$0xf]
  %v337 = vld [vmem:[%s298 + $0x24] sm:$0xf]
  %v338 = vld [vmem:[%s298 + $0x34] sm:$0xf]
  %v339 = vld [vmem:[%s298 + $0x104] sm:$0xf]
  %v340 = vld [vmem:[%s298 + $0x114] sm:$0xf]
  %v341 = vld [vmem:[%s298 + $0x124] sm:$0xf]
  %v342 = vld [vmem:[%s298 + $0x134] sm:$0xf]
  %v343 = vsel %vm16, %v335, -inf
  %v344 = vsel %vm16, %v336, -inf
  %v345 = vsel %vm16, %v337, -inf
  %v346 = vmax.f32 %v343, %v345
  %v347 = vsel %vm16, %v338, -inf
  %v348 = vmax.f32 %v344, %v347
  %v349 = vmax.f32 %v346, %v348
  %v350 = vsel %vm16, %v339, -inf
  %v351 = vsel %vm16, %v340, -inf
  %v352 = vsel %vm16, %v341, -inf
  %v353 = vmax.f32 %v350, %v352
  %v354 = vsel %vm16, %v342, -inf
  %v355 = vmax.f32 %v351, %v354
  %v356 = vmax.f32 %v353, %v355
  %v357 = vsel %vm16, %v349, -inf
  %v358 = vrot.slane %v357, 4
  %v359 = vmax.f32 %v357, %v358
  %v360 = vrot.slane %v359, 2
  %v361 = vmax.f32 %v359, %v360
  %v362 = vrot.slane %v361, 1
  %v363 = vmax.f32 %v361, %v362
  %v364 = vsel %vm16, %v356, -inf
  %v365 = vrot.slane %v364, 4
  %v366 = vmax.f32 %v364, %v365
  %v367 = vrot.slane %v366, 2
  %v368 = vmax.f32 %v366, %v367
  %v369 = vrot.slane %v368, 1
  %v370 = vmax.f32 %v368, %v369
  %v371 = vld [vmem:[%s298 + $0x8] sm:$0xf]
  %v372 = vld [vmem:[%s298 + $0x18] sm:$0xf]
  %v373 = vld [vmem:[%s298 + $0x28] sm:$0xf]
  %v374 = vld [vmem:[%s298 + $0x38] sm:$0xf]
  %v375 = vld [vmem:[%s298 + $0x108] sm:$0xf]
  %v376 = vld [vmem:[%s298 + $0x118] sm:$0xf]
  %v377 = vld [vmem:[%s298 + $0x128] sm:$0xf]
  %v378 = vld [vmem:[%s298 + $0x138] sm:$0xf]
  %v379 = vsel %vm16, %v371, -inf
  %v380 = vsel %vm16, %v372, -inf
  %v381 = vsel %vm16, %v373, -inf
  %v382 = vmax.f32 %v379, %v381
  %v383 = vsel %vm16, %v374, -inf
  %v384 = vmax.f32 %v380, %v383
  %v385 = vmax.f32 %v382, %v384
  %v386 = vsel %vm16, %v375, -inf
  %v387 = vsel %vm16, %v376, -inf
  %v388 = vsel %vm16, %v377, -inf
  %v389 = vmax.f32 %v386, %v388
  %v390 = vsel %vm16, %v378, -inf
  %v391 = vmax.f32 %v387, %v390
  %v392 = vmax.f32 %v389, %v391
  %v393 = vsel %vm16, %v385, -inf
  %v394 = vrot.slane %v393, 4
  %v395 = vmax.f32 %v393, %v394
  %v396 = vrot.slane %v395, 2
  %v397 = vmax.f32 %v395, %v396
  %v398 = vrot.slane %v397, 1
  %v399 = vmax.f32 %v397, %v398
  %v400 = vsel %vm16, %v392, -inf
  %v401 = vrot.slane %v400, 4
  %v402 = vmax.f32 %v400, %v401
  %v403 = vrot.slane %v402, 2
  %v404 = vmax.f32 %v402, %v403
  %v405 = vrot.slane %v404, 1
  %v406 = vmax.f32 %v404, %v405
  %v407 = vld [vmem:[%s298 + $0xc] sm:$0xf]
  %v408 = vld [vmem:[%s298 + $0x1c] sm:$0xf]
  %v409 = vld [vmem:[%s298 + $0x2c] sm:$0xf]
  %v410 = vld [vmem:[%s298 + $0x3c] sm:$0xf]
  %v411 = vld [vmem:[%s298 + $0x10c] sm:$0xf]
  %v412 = vld [vmem:[%s298 + $0x11c] sm:$0xf]
  %v413 = vld [vmem:[%s298 + $0x12c] sm:$0xf]
  %v414 = vld [vmem:[%s298 + $0x13c] sm:$0xf]
  %v415 = vsel %vm16, %v407, -inf
  %v416 = vsel %vm16, %v408, -inf
  %v417 = vsel %vm16, %v409, -inf
  %v418 = vmax.f32 %v415, %v417
  %v419 = vsel %vm16, %v410, -inf
  %v420 = vmax.f32 %v416, %v419
  %v421 = vmax.f32 %v418, %v420
  %v422 = vsel %vm16, %v411, -inf
  %v423 = vsel %vm16, %v412, -inf
  %v424 = vsel %vm16, %v413, -inf
  %v425 = vmax.f32 %v422, %v424
  %v426 = vsel %vm16, %v414, -inf
  %v427 = vmax.f32 %v423, %v426
  %v428 = vmax.f32 %v425, %v427
  %v429 = vsel %vm16, %v421, -inf
  %v430 = vrot.slane %v429, 4
  %v431 = vmax.f32 %v429, %v430
  %v432 = vrot.slane %v431, 2
  %v433 = vmax.f32 %v431, %v432
  %v434 = vrot.slane %v433, 1
  %v435 = vmax.f32 %v433, %v434
  %v436 = vsel %vm16, %v428, -inf
  %v437 = vrot.slane %v436, 4
  %v438 = vmax.f32 %v436, %v437
  %v439 = vrot.slane %v438, 2
  %v440 = vmax.f32 %v438, %v439
  %v441 = vrot.slane %v440, 1
  %v442 = vmax.f32 %v440, %v441
  %s443 = scalar_lea.vmem %s0, 192
  %v444 = vld [vmem:[%s443] sm:$0xf]
  %v445 = vld [vmem:[%s443 + $0x10] sm:$0xf]
  %v446 = vld [vmem:[%s443 + $0x20] sm:$0xf]
  %v447 = vld [vmem:[%s443 + $0x30] sm:$0xf]
  %v448 = vld [vmem:[%s443 + $0x100] sm:$0xf]
  %v449 = vld [vmem:[%s443 + $0x110] sm:$0xf]
  %v450 = vld [vmem:[%s443 + $0x120] sm:$0xf]
  %v451 = vld [vmem:[%s443 + $0x130] sm:$0xf]
  %v452 = vsel %vm16, %v444, -inf
  %v453 = vsel %vm16, %v445, -inf
  %v454 = vsel %vm16, %v446, -inf
  %v455 = vmax.f32 %v452, %v454
  %v456 = vsel %vm16, %v447, -inf
  %v457 = vmax.f32 %v453, %v456
  %v458 = vmax.f32 %v455, %v457
  %v459 = vsel %vm16, %v448, -inf
  %v460 = vsel %vm16, %v449, -inf
  %v461 = vsel %vm16, %v450, -inf
  %v462 = vmax.f32 %v459, %v461
  %v463 = vsel %vm16, %v451, -inf
  %v464 = vmax.f32 %v460, %v463
  %v465 = vmax.f32 %v462, %v464
  %v466 = vsel %vm16, %v458, -inf
  %v467 = vrot.slane %v466, 4
  %v468 = vmax.f32 %v466, %v467
  %v469 = vrot.slane %v468, 2
  %v470 = vmax.f32 %v468, %v469
  %v471 = vrot.slane %v470, 1
  %v472 = vmax.f32 %v470, %v471
  %v473 = vsel %vm16, %v465, -inf
  %v474 = vrot.slane %v473, 4
  %v475 = vmax.f32 %v473, %v474
  %v476 = vrot.slane %v475, 2
  %v477 = vmax.f32 %v475, %v476
  %v478 = vrot.slane %v477, 1
  %v479 = vmax.f32 %v477, %v478
  %v480 = vld [vmem:[%s443 + $0x4] sm:$0xf]
  %v481 = vld [vmem:[%s443 + $0x14] sm:$0xf]
  %v482 = vld [vmem:[%s443 + $0x24] sm:$0xf]
  %v483 = vld [vmem:[%s443 + $0x34] sm:$0xf]
  %v484 = vld [vmem:[%s443 + $0x104] sm:$0xf]
  %v485 = vld [vmem:[%s443 + $0x114] sm:$0xf]
  %v486 = vld [vmem:[%s443 + $0x124] sm:$0xf]
  %v487 = vld [vmem:[%s443 + $0x134] sm:$0xf]
  %v488 = vsel %vm16, %v480, -inf
  %v489 = vsel %vm16, %v481, -inf
  %v490 = vsel %vm16, %v482, -inf
  %v491 = vmax.f32 %v488, %v490
  %v492 = vsel %vm16, %v483, -inf
  %v493 = vmax.f32 %v489, %v492
  %v494 = vmax.f32 %v491, %v493
  %v495 = vsel %vm16, %v484, -inf
  %v496 = vsel %vm16, %v485, -inf
  %v497 = vsel %vm16, %v486, -inf
  %v498 = vmax.f32 %v495, %v497
  %v499 = vsel %vm16, %v487, -inf
  %v500 = vmax.f32 %v496, %v499
  %v501 = vmax.f32 %v498, %v500
  %v502 = vsel %vm16, %v494, -inf
  %v503 = vrot.slane %v502, 4
  %v504 = vmax.f32 %v502, %v503
  %v505 = vrot.slane %v504, 2
  %v506 = vmax.f32 %v504, %v505
  %v507 = vrot.slane %v506, 1
  %v508 = vmax.f32 %v506, %v507
  %v509 = vsel %vm16, %v501, -inf
  %v510 = vrot.slane %v509, 4
  %v511 = vmax.f32 %v509, %v510
  %v512 = vrot.slane %v511, 2
  %v513 = vmax.f32 %v511, %v512
  %v514 = vrot.slane %v513, 1
  %v515 = vmax.f32 %v513, %v514
  %v516 = vld [vmem:[%s443 + $0x8] sm:$0xf]
  %v517 = vld [vmem:[%s443 + $0x18] sm:$0xf]
  %v518 = vld [vmem:[%s443 + $0x28] sm:$0xf]
  %v519 = vld [vmem:[%s443 + $0x38] sm:$0xf]
  %v520 = vld [vmem:[%s443 + $0x108] sm:$0xf]
  %v521 = vld [vmem:[%s443 + $0x118] sm:$0xf]
  %v522 = vld [vmem:[%s443 + $0x128] sm:$0xf]
  %v523 = vld [vmem:[%s443 + $0x138] sm:$0xf]
  %v524 = vsel %vm16, %v516, -inf
  %v525 = vsel %vm16, %v517, -inf
  %v526 = vsel %vm16, %v518, -inf
  %v527 = vmax.f32 %v524, %v526
  %v528 = vsel %vm16, %v519, -inf
  %v529 = vmax.f32 %v525, %v528
  %v530 = vmax.f32 %v527, %v529
  %v531 = vsel %vm16, %v520, -inf
  %v532 = vsel %vm16, %v521, -inf
  %v533 = vsel %vm16, %v522, -inf
  %v534 = vmax.f32 %v531, %v533
  %v535 = vsel %vm16, %v523, -inf
  %v536 = vmax.f32 %v532, %v535
  %v537 = vmax.f32 %v534, %v536
  %v538 = vsel %vm16, %v530, -inf
  %v539 = vrot.slane %v538, 4
  %v540 = vmax.f32 %v538, %v539
  %v541 = vrot.slane %v540, 2
  %v542 = vmax.f32 %v540, %v541
  %v543 = vrot.slane %v542, 1
  %v544 = vmax.f32 %v542, %v543
  %v545 = vsel %vm16, %v537, -inf
  %v546 = vrot.slane %v545, 4
  %v547 = vmax.f32 %v545, %v546
  %v548 = vrot.slane %v547, 2
  %v549 = vmax.f32 %v547, %v548
  %v550 = vrot.slane %v549, 1
  %v551 = vmax.f32 %v549, %v550
  %v552 = vld [vmem:[%s443 + $0xc] sm:$0xf]
  %v553 = vld [vmem:[%s443 + $0x1c] sm:$0xf]
  %v554 = vld [vmem:[%s443 + $0x2c] sm:$0xf]
  %v555 = vld [vmem:[%s443 + $0x3c] sm:$0xf]
  %v556 = vld [vmem:[%s443 + $0x10c] sm:$0xf]
  %v557 = vld [vmem:[%s443 + $0x11c] sm:$0xf]
  %v558 = vld [vmem:[%s443 + $0x12c] sm:$0xf]
  %v559 = vld [vmem:[%s443 + $0x13c] sm:$0xf]
  %v560 = vsel %vm16, %v552, -inf
  %v561 = vsel %vm16, %v553, -inf
  %v562 = vsel %vm16, %v554, -inf
  %v563 = vmax.f32 %v560, %v562
  %v564 = vsel %vm16, %v555, -inf
  %v565 = vmax.f32 %v561, %v564
  %v566 = vmax.f32 %v563, %v565
  %v567 = vsel %vm16, %v556, -inf
  %v568 = vsel %vm16, %v557, -inf
  %v569 = vsel %vm16, %v558, -inf
  %v570 = vmax.f32 %v567, %v569
  %v571 = vsel %vm16, %v559, -inf
  %v572 = vmax.f32 %v568, %v571
  %v573 = vmax.f32 %v570, %v572
  %v574 = vsel %vm16, %v566, -inf
  %v575 = vrot.slane %v574, 4
  %v576 = vmax.f32 %v574, %v575
  %v577 = vrot.slane %v576, 2
  %v578 = vmax.f32 %v576, %v577
  %v579 = vrot.slane %v578, 1
  %v580 = vmax.f32 %v578, %v579
  %v581 = vsel %vm16, %v573, -inf
  %v582 = vrot.slane %v581, 4
  %v583 = vmax.f32 %v581, %v582
  %v584 = vrot.slane %v583, 2
  %v585 = vmax.f32 %v583, %v584
  %v586 = vrot.slane %v585, 1
  %v587 = vmax.f32 %v585, %v586
  %v588 = vmax.f32 %v37, %v73
  %v589 = vmax.f32 %v44, %v80
  %v590 = vmax.f32 %v182, %v218
  %v591 = vmax.f32 %v189, %v225
  %v592 = vmax.f32 %v588, %v590
  %v593 = vmax.f32 %v589, %v591
  %v594 = vmax.f32 %v109, %v145
  %v595 = vmax.f32 %v116, %v152
  %v596 = vmax.f32 %v254, %v290
  %v597 = vmax.f32 %v261, %v297
  %v598 = vmax.f32 %v594, %v596
  %v599 = vmax.f32 %v595, %v597
  %v600 = vmax.f32 %v327, %v363
  %v601 = vmax.f32 %v334, %v370
  %v602 = vmax.f32 %v472, %v508
  %v603 = vmax.f32 %v479, %v515
  %v604 = vmax.f32 %v600, %v602
  %v605 = vmax.f32 %v601, %v603
  %v606 = vmax.f32 %v399, %v435
  %v607 = vmax.f32 %v406, %v442
  %v608 = vmax.f32 %v544, %v580
  %v609 = vmax.f32 %v551, %v587
  %v610 = vmax.f32 %v606, %v608
  %v611 = vmax.f32 %v607, %v609
  %v612 = vmax.f32 %v592, %v598
  %v613 = vmax.f32 %v593, %v599
  %v614 = vmax.f32 %v604, %v610
  %v615 = vmax.f32 %v605, %v611
  %v616 = vmax.f32 %v612, %v614
  %v617 = vmax.f32 %v613, %v615
  %vm618 = vcmask 24576
  %619 = vst.msk [vmem:[%s1] sm:$0x1] %vm618, %v616
  %620 = vst.msk [vmem:[%s1 + $0x18] sm:$0x1] %vm618, %v617
  %621 = vst.msk [vmem:[%s1 + $0x1] sm:$0x1] %vm618, %v592
  %622 = vst.msk [vmem:[%s1 + $0x19] sm:$0x1] %vm618, %v593
  %623 = vst.msk [vmem:[%s1 + $0x2] sm:$0x1] %vm618, %v598
  %624 = vst.msk [vmem:[%s1 + $0x1a] sm:$0x1] %vm618, %v599
  %625 = vst.msk [vmem:[%s1 + $0x3] sm:$0x1] %vm618, %v604
  %626 = vst.msk [vmem:[%s1 + $0x1b] sm:$0x1] %vm618, %v605
  %627 = vst.msk [vmem:[%s1 + $0x4] sm:$0x1] %vm618, %v610
  %628 = vst.msk [vmem:[%s1 + $0x1c] sm:$0x1] %vm618, %v611
  %629 = vst.msk [vmem:[%s1 + $0x5] sm:$0x1] %vm618, %v37
  %630 = vst.msk [vmem:[%s1 + $0x1d] sm:$0x1] %vm618, %v44
  %631 = vst.msk [vmem:[%s1 + $0x6] sm:$0x1] %vm618, %v73
  %632 = vst.msk [vmem:[%s1 + $0x1e] sm:$0x1] %vm618, %v80
  %633 = vst.msk [vmem:[%s1 + $0x7] sm:$0x1] %vm618, %v109
  %634 = vst.msk [vmem:[%s1 + $0x1f] sm:$0x1] %vm618, %v116
  %635 = vst.msk [vmem:[%s1 + $0x8] sm:$0x1] %vm618, %v145
  %636 = vst.msk [vmem:[%s1 + $0x20] sm:$0x1] %vm618, %v152
  %637 = vst.msk [vmem:[%s1 + $0x9] sm:$0x1] %vm618, %v182
  %638 = vst.msk [vmem:[%s1 + $0x21] sm:$0x1] %vm618, %v189
  %639 = vst.msk [vmem:[%s1 + $0xa] sm:$0x1] %vm618, %v218
  %640 = vst.msk [vmem:[%s1 + $0x22] sm:$0x1] %vm618, %v225
  %641 = vst.msk [vmem:[%s1 + $0xb] sm:$0x1] %vm618, %v254
  %642 = vst.msk [vmem:[%s1 + $0x23] sm:$0x1] %vm618, %v261
  %643 = vst.msk [vmem:[%s1 + $0xc] sm:$0x1] %vm618, %v290
  %644 = vst.msk [vmem:[%s1 + $0x24] sm:$0x1] %vm618, %v297
  %645 = vst.msk [vmem:[%s1 + $0xd] sm:$0x1] %vm618, %v327
  %646 = vst.msk [vmem:[%s1 + $0x25] sm:$0x1] %vm618, %v334
  %647 = vst.msk [vmem:[%s1 + $0xe] sm:$0x1] %vm618, %v363
  %648 = vst.msk [vmem:[%s1 + $0x26] sm:$0x1] %vm618, %v370
  %649 = vst.msk [vmem:[%s1 + $0xf] sm:$0x1] %vm618, %v399
  %650 = vst.msk [vmem:[%s1 + $0x27] sm:$0x1] %vm618, %v406
  %651 = vst.msk [vmem:[%s1 + $0x10] sm:$0x1] %vm618, %v435
  %652 = vst.msk [vmem:[%s1 + $0x28] sm:$0x1] %vm618, %v442
  %653 = vst.msk [vmem:[%s1 + $0x11] sm:$0x1] %vm618, %v472
  %654 = vst.msk [vmem:[%s1 + $0x29] sm:$0x1] %vm618, %v479
  %655 = vst.msk [vmem:[%s1 + $0x12] sm:$0x1] %vm618, %v508
  %656 = vst.msk [vmem:[%s1 + $0x2a] sm:$0x1] %vm618, %v515
  %657 = vst.msk [vmem:[%s1 + $0x13] sm:$0x1] %vm618, %v544
  %658 = vst.msk [vmem:[%s1 + $0x2b] sm:$0x1] %vm618, %v551
  %659 = vst.msk [vmem:[%s1 + $0x14] sm:$0x1] %vm618, %v580
  %660 = vst.msk [vmem:[%s1 + $0x2c] sm:$0x1] %vm618, %v587
  // Predicated region
  $region6: #{tpu_custom_call.1} parent=0 // pred_check
    _
  $region7: #{tpu_custom_call.1} parent=0 // pred_check_branch
    %662 = sbr.rel (0) target = $region9
  $region8: #{tpu_custom_call.1} parent=0 // pred_region
    _
  $region9: #{tpu_custom_call.1} parent=0 // pred_fallthru
    _
  // Predicated region
  $region10: #{tpu_custom_call.1} parent=0 // pred_check
    _
  $region11: #{tpu_custom_call.1} parent=0 // pred_check_branch
    %664 = sbr.rel (0) target = $region13
  $region12: #{tpu_custom_call.1} parent=0 // pred_region
    _
  $region13: #{tpu_custom_call.1} parent=0 // pred_fallthru
    _

</llo_original>
